<compile_context>
chip_gen: v7x
topology: tpu7x:2x2x1
jax: 0.10.0
libtpu: 0.0.40
codegen_flags: <defaults>
</compile_context>

<pallas_src>
import math

import jax
import jax.numpy as jnp
from jax.experimental import pallas as pl
from jax.experimental.pallas import tpu as pltpu

# The pure-JAX reference must use full-f32 matmuls (like the PyTorch spec);
# the in-kernel dots control their own precision explicitly (bf16 hi/lo split).
jax.config.update("jax_default_matmul_precision", "highest")


def _cdiv(a, b):
    return -(-a // b)


def _balance_kernel(ft_ref, nb_ref, w_hi_ref, w_lo_ref, bias_ref,
                    mis_ref, red_ref):
    """One row tile: merged lane-dense [TM, 2L] affine map on the MXU.

    ft_ref, nb_ref     : VMEM [TM, L] f32     folded input rows (L = k*F lanes)
    w_hi_ref, w_lo_ref : VMEM [2, L, 2L] bf16 hi/lo halves of folded weights
                         [0] = [kron(I_k, M_mis_f) | kron(I_k, M_red_f)]
                         [1] = [kron(I_k, M_mis_n) | kron(I_k, M_red_n)]
    bias_ref           : SMEM [2] f32         (b_beta_m, b_beta_r)
    mis_ref, red_ref   : VMEM [TM, L] f32
    """
    f32 = jnp.float32
    bf16 = jnp.bfloat16

    ft = ft_ref[...]
    nb = nb_ref[...]
    # Manual bf16_3x ("HIGH") decomposition: x ~ x_hi + x_lo, W ~ W_hi + W_lo,
    # drop the lo*lo term -> 3 single-pass bf16 MXU dots per operand pair.
    ft_hi = ft.astype(bf16)
    ft_lo = (ft - ft_hi.astype(f32)).astype(bf16)
    nb_hi = nb.astype(bf16)
    nb_lo = (nb - nb_hi.astype(f32)).astype(bf16)

    wf_hi = w_hi_ref[0]
    wn_hi = w_hi_ref[1]
    wf_lo = w_lo_ref[0]
    wn_lo = w_lo_ref[1]

    def dot(a, b):
        # bf16 x bf16 -> f32 accumulate: native single-pass MXU path.
        return jnp.dot(a, b, preferred_element_type=f32,
                       precision=jax.lax.Precision.DEFAULT)

    acc = (dot(ft_hi, wf_hi) + dot(nb_hi, wn_hi)      # hi * hi (main term)
           + dot(ft_hi, wf_lo) + dot(nb_hi, wn_lo)    # hi * lo
           + dot(ft_lo, wf_hi) + dot(nb_lo, wn_hi))   # lo * hi

    L = mis_ref.shape[-1]                             # 128-aligned split: free
    mis_ref[...] = acc[:, :L] + bias_ref[0]
    red_ref[...] = acc[:, L:] + bias_ref[1]


def balance_feature(ft, neighbor, params, *, block_rows=2048):
    """Pallas implementation of BalanceFeature.forward.

    ft, neighbor: [N, F] float32.  Returns (mis, redundancy), each [N, F] f32.
    block_rows is the tile size in *folded* rows (sweep 1024-4096 per
    generation; the explicit vmem_limit below scales with it).
    """
    N, F = ft.shape
    assert neighbor.shape == (N, F)

    ft = ft.astype(jnp.float32)
    neighbor = neighbor.astype(jnp.float32)

    # ---- host-side weight folding (exact, broadcast-only, O(F^2)) ----------
    w_gamma = params["w_gamma"].astype(jnp.float32)    # [1, 2F]
    w_bm = params["w_beta_m"].astype(jnp.float32)      # [1, 2F]
    w_br = params["w_beta_r"].astype(jnp.float32)      # [1, 2F]
    mis_v = params["mis"].astype(jnp.float32)          # [1, F]
    red_v = params["redundancy"].astype(jnp.float32)   # [1, F]

    wg_f, wg_n = w_gamma[:, :F], w_gamma[:, F:]
    wm_f, wm_n = w_bm[:, :F], w_bm[:, F:]
    wr_f, wr_n = w_br[:, :F], w_br[:, F:]

    m_mis_f = wg_f.T * mis_v + wm_f.T                  # [F, F]
    m_mis_n = wg_n.T * mis_v + wm_n.T
    m_red_f = wg_f.T * red_v + wr_f.T
    m_red_n = wg_n.T * red_v + wr_n.T

    # ---- lane-dense fold: pack k rows into one L = k*F lane row ------------
    if F < 128:
        lcm = math.lcm(F, 128)
        # kron blow-up is k x per weight; only fold when folded width is small.
        k = lcm // F if lcm <= 512 else 1
        # TODO(synk): for awkward small F (lcm > 512, e.g. F=100) lane-pad the
        # weights' output dim to a multiple of 128 instead of falling back to
        # k = 1 (which leaves masked vst.msk partial stores).
    else:
        k = 1
        # TODO(synk): for large F (>~512) tile the contraction over a second
        # 'arbitrary' grid axis with a VMEM accumulator instead of keeping the
        # full [L, 2L] weight slab resident (matters for v7x's 64 MiB VMEM).
    L = k * F

    eye_k = jnp.eye(k, dtype=jnp.float32)

    def fold(m):                                       # [F,F] -> block-diag [L,L]
        return jnp.kron(eye_k, m)

    w_all = jnp.stack([
        jnp.concatenate([fold(m_mis_f), fold(m_red_f)], axis=1),   # [L, 2L]
        jnp.concatenate([fold(m_mis_n), fold(m_red_n)], axis=1),
    ])                                                 # [2, L, 2L] f32
    # bf16 hi/lo halves (kernel's manual 3-pass scheme), built once.
    w_hi = w_all.astype(jnp.bfloat16)
    w_lo = (w_all - w_hi.astype(jnp.float32)).astype(jnp.bfloat16)

    biases = jnp.stack(
        [params["b_beta_m"], params["b_beta_r"]]).astype(jnp.float32)  # [2]

    # ---- row fold: pad ONLY to a multiple of k (no pad-to-tile) ------------
    n_pad = _cdiv(N, k) * k
    if n_pad != N:  # only when N % k != 0; the only case with an extra I/O pass
        ft = jnp.pad(ft, ((0, n_pad - N), (0, 0)))
        neighbor = jnp.pad(neighbor, ((0, n_pad - N), (0, 0)))
    rows = n_pad // k
    ft_f = ft.reshape(rows, L)                         # free (contiguous)
    nb_f = neighbor.reshape(rows, L)

    # Row tile: sublane-aligned; capped at ceil(rows/2) so the 'parallel' grid
    # axis has >= 2 steps (v7x megacore) and the pipeline stays overlapped.
    tm = min(block_rows, _cdiv(_cdiv(rows, 2), 8) * 8)
    if tm >= rows:
        tm = rows                                      # single full-extent block
    num_blocks = _cdiv(rows, tm)                       # partial last block is OK

    # ---- explicit VMEM budget ------------------------------------------------
    io_bytes = 4 * 2 * tm * L * 4            # ft/nb/mis/red tiles, double-buffered
    w_bytes = 2 * int(w_all.size) * 2        # two resident bf16 weight slabs
    tmp_bytes = 4 * tm * L * 2 + 4 * tm * 2 * L * 4   # hi/lo copies + acc temps
    vmem_limit = int(max(io_bytes + w_bytes + tmp_bytes + (2 << 20), 32 << 20))

    row_spec = pl.BlockSpec((tm, L), lambda i: (i, 0))
    w_spec = pl.BlockSpec(memory_space=pltpu.MemorySpace.VMEM)   # whole, 1 copy
    bias_spec = pl.BlockSpec(memory_space=pltpu.MemorySpace.SMEM)

    grid_spec = pltpu.PrefetchScalarGridSpec(
        num_scalar_prefetch=0,
        grid=(num_blocks,),
        in_specs=[row_spec, row_spec, w_spec, w_spec, bias_spec],
        out_specs=[row_spec, row_spec],
    )

    mis_f, red_f = pl.pallas_call(
        _balance_kernel,
        out_shape=(jax.ShapeDtypeStruct((rows, L), jnp.float32),
                   jax.ShapeDtypeStruct((rows, L), jnp.float32)),
        grid_spec=grid_spec,
        compiler_params=pltpu.CompilerParams(
            dimension_semantics=("parallel",),
            vmem_limit_bytes=vmem_limit),
    )(ft_f, nb_f, w_hi, w_lo, biases)

    mis = mis_f.reshape(n_pad, F)
    red = red_f.reshape(n_pad, F)
    if n_pad != N:
        mis, red = mis[:N], red[:N]
    return mis, red


def init_params(key, in_features):
    """Deterministic init matching the shapes / init ranges of the nn.Module."""
    F = in_features
    k = jax.random.split(key, 7)
    stdv_lin = 1.0 / math.sqrt(2 * F)     # PyTorch default Linear init bound
    stdv_par = 1.0 / math.sqrt(F)         # reset_parameter() bound
    return {
        "w_gamma": jax.random.uniform(k[0], (1, 2 * F), jnp.float32, -stdv_lin, stdv_lin),
        "w_beta_m": jax.random.uniform(k[1], (1, 2 * F), jnp.float32, -stdv_lin, stdv_lin),
        "b_beta_m": jax.random.uniform(k[2], (), jnp.float32, -stdv_lin, stdv_lin),
        "w_beta_r": jax.random.uniform(k[3], (1, 2 * F), jnp.float32, -stdv_lin, stdv_lin),
        "b_beta_r": jax.random.uniform(k[4], (), jnp.float32, -stdv_lin, stdv_lin),
        "mis": jax.random.uniform(k[5], (1, F), jnp.float32, -stdv_par, stdv_par),
        "redundancy": jax.random.uniform(k[6], (1, F), jnp.float32, -stdv_par, stdv_par),
    }


def balance_feature_ref(ft, neighbor, params):
    """Pure-JAX reference mirroring the PyTorch forward exactly (f32 matmuls)."""
    x_cat = jnp.concatenate([ft, neighbor], axis=1)               # [N, 2F]
    g = x_cat @ params["w_gamma"].T                               # [N, 1]
    bm = x_cat @ params["w_beta_m"].T + params["b_beta_m"]        # [N, 1]
    br = x_cat @ params["w_beta_r"].T + params["b_beta_r"]        # [N, 1]
    mis = g * params["mis"] + bm
    red = g * params["redundancy"] + br
    return mis, red


if __name__ == "__main__":
    key = jax.random.PRNGKey(0)
    kp, kf, kn = jax.random.split(key, 3)

    F = 32
    params = init_params(kp, F)

    # N=128: exact fold / exact tiling.  N=118: exercises the tiny fold pad
    # (118 -> 120 rows) and the masked partial last grid block.
    for N in (128, 118):
        ft = jax.random.normal(kf, (N, F), jnp.float32)
        neighbor = jax.random.normal(kn, (N, F), jnp.float32)

        mis, red = balance_feature(ft, neighbor, params)
        jax.block_until_ready((mis, red))

        mis_ref, red_ref = balance_feature_ref(ft, neighbor, params)
        assert mis.shape == (N, F) and red.shape == (N, F)
        assert jnp.allclose(mis, mis_ref, atol=1e-4, rtol=1e-4), N
        assert jnp.allclose(red, red_ref, atol=1e-4, rtol=1e-4), N

    print("KERNEL_OK")
</pallas_src>

<mosaic_0001>
module attributes {stable_mosaic.version = 11 : i64} {
  func.func @_balance_kernel(%arg0: i32, %arg1: memref<16x128xf32, #tpu.memory_space<vmem>>, %arg2: memref<16x128xf32, #tpu.memory_space<vmem>>, %arg3: memref<2x128x256xbf16, #tpu.memory_space<vmem>>, %arg4: memref<2x128x256xbf16, #tpu.memory_space<vmem>>, %arg5: memref<2xf32, #tpu.memory_space<smem>>, %arg6: memref<16x128xf32, #tpu.memory_space<vmem>>, %arg7: memref<16x128xf32, #tpu.memory_space<vmem>>) attributes {dimension_semantics = [#tpu.dimension_semantics<parallel>], iteration_bounds = array<i64: 2>, scalar_prefetch = 0 : i64, scratch_operands = 0 : i64, tpu.core_type = #tpu.core_type<tc>, window_params = [{transform_indices = @transform_0, window_bounds = array<i64: 16, 128>}, {transform_indices = @transform_1, window_bounds = array<i64: 16, 128>}, {pipeline_mode = #tpu.pipeline_mode<synchronous>, transform_indices = @transform_2, window_bounds = array<i64: 2, 128, 256>}, {pipeline_mode = #tpu.pipeline_mode<synchronous>, transform_indices = @transform_3, window_bounds = array<i64: 2, 128, 256>}, {transform_indices = @transform_4, window_bounds = array<i64: 2>}, {transform_indices = @transform_5, window_bounds = array<i64: 16, 128>}, {transform_indices = @transform_6, window_bounds = array<i64: 16, 128>}]} {
    %c0 = arith.constant 0 : index
    %c0_0 = arith.constant 0 : index
    %0 = vector.load %arg1[%c0, %c0_0] : memref<16x128xf32, #tpu.memory_space<vmem>>, vector<16x128xf32>
    %c0_1 = arith.constant 0 : index
    %c0_2 = arith.constant 0 : index
    %1 = vector.load %arg2[%c0_1, %c0_2] : memref<16x128xf32, #tpu.memory_space<vmem>>, vector<16x128xf32>
    %2 = arith.truncf %0 : vector<16x128xf32> to vector<16x128xbf16>
    %3 = arith.extf %2 : vector<16x128xbf16> to vector<16x128xf32>
    %4 = arith.subf %0, %3 : vector<16x128xf32>
    %5 = arith.truncf %4 : vector<16x128xf32> to vector<16x128xbf16>
    %6 = arith.truncf %1 : vector<16x128xf32> to vector<16x128xbf16>
    %7 = arith.extf %6 : vector<16x128xbf16> to vector<16x128xf32>
    %8 = arith.subf %1, %7 : vector<16x128xf32>
    %9 = arith.truncf %8 : vector<16x128xf32> to vector<16x128xbf16>
    %c0_3 = arith.constant 0 : index
    %c0_4 = arith.constant 0 : index
    %c0_5 = arith.constant 0 : index
    %10 = vector.load %arg3[%c0_3, %c0_4, %c0_5] : memref<2x128x256xbf16, #tpu.memory_space<vmem>>, vector<1x128x256xbf16>
    %11 = vector.shape_cast %10 : vector<1x128x256xbf16> to vector<128x256xbf16>
    %c1 = arith.constant 1 : index
    %c0_6 = arith.constant 0 : index
    %c0_7 = arith.constant 0 : index
    %12 = vector.load %arg3[%c1, %c0_6, %c0_7] : memref<2x128x256xbf16, #tpu.memory_space<vmem>>, vector<1x128x256xbf16>
    %13 = vector.shape_cast %12 : vector<1x128x256xbf16> to vector<128x256xbf16>
    %c0_8 = arith.constant 0 : index
    %c0_9 = arith.constant 0 : index
    %c0_10 = arith.constant 0 : index
    %14 = vector.load %arg4[%c0_8, %c0_9, %c0_10] : memref<2x128x256xbf16, #tpu.memory_space<vmem>>, vector<1x128x256xbf16>
    %15 = vector.shape_cast %14 : vector<1x128x256xbf16> to vector<128x256xbf16>
    %c1_11 = arith.constant 1 : index
    %c0_12 = arith.constant 0 : index
    %c0_13 = arith.constant 0 : index
    %16 = vector.load %arg4[%c1_11, %c0_12, %c0_13] : memref<2x128x256xbf16, #tpu.memory_space<vmem>>, vector<1x128x256xbf16>
    %17 = vector.shape_cast %16 : vector<1x128x256xbf16> to vector<128x256xbf16>
    %cst = arith.constant dense<0.000000e+00> : vector<16x256xf32>
    %18 = tpu.matmul %2, %11, %cst {dimension_numbers = #tpu.dot_dimension_numbers<[1], [0], [0], [1], [0, 0, 1, 1], [], []>} : vector<16x128xbf16>, vector<128x256xbf16>, vector<16x256xf32> -> vector<16x256xf32>
    %cst_14 = arith.constant dense<0.000000e+00> : vector<16x256xf32>
    %19 = tpu.matmul %6, %13, %cst_14 {dimension_numbers = #tpu.dot_dimension_numbers<[1], [0], [0], [1], [0, 0, 1, 1], [], []>} : vector<16x128xbf16>, vector<128x256xbf16>, vector<16x256xf32> -> vector<16x256xf32>
    %20 = arith.addf %18, %19 : vector<16x256xf32>
    %cst_15 = arith.constant dense<0.000000e+00> : vector<16x256xf32>
    %21 = tpu.matmul %2, %15, %cst_15 {dimension_numbers = #tpu.dot_dimension_numbers<[1], [0], [0], [1], [0, 0, 1, 1], [], []>} : vector<16x128xbf16>, vector<128x256xbf16>, vector<16x256xf32> -> vector<16x256xf32>
    %22 = arith.addf %20, %21 : vector<16x256xf32>
    %cst_16 = arith.constant dense<0.000000e+00> : vector<16x256xf32>
    %23 = tpu.matmul %6, %17, %cst_16 {dimension_numbers = #tpu.dot_dimension_numbers<[1], [0], [0], [1], [0, 0, 1, 1], [], []>} : vector<16x128xbf16>, vector<128x256xbf16>, vector<16x256xf32> -> vector<16x256xf32>
    %24 = arith.addf %22, %23 : vector<16x256xf32>
    %cst_17 = arith.constant dense<0.000000e+00> : vector<16x256xf32>
    %25 = tpu.matmul %5, %11, %cst_17 {dimension_numbers = #tpu.dot_dimension_numbers<[1], [0], [0], [1], [0, 0, 1, 1], [], []>} : vector<16x128xbf16>, vector<128x256xbf16>, vector<16x256xf32> -> vector<16x256xf32>
    %26 = arith.addf %24, %25 : vector<16x256xf32>
    %cst_18 = arith.constant dense<0.000000e+00> : vector<16x256xf32>
    %27 = tpu.matmul %9, %13, %cst_18 {dimension_numbers = #tpu.dot_dimension_numbers<[1], [0], [0], [1], [0, 0, 1, 1], [], []>} : vector<16x128xbf16>, vector<128x256xbf16>, vector<16x256xf32> -> vector<16x256xf32>
    %28 = arith.addf %26, %27 : vector<16x256xf32>
    %29 = vector.extract_strided_slice %28 {offsets = [0, 0], sizes = [16, 128], strides = [1, 1]} : vector<16x256xf32> to vector<16x128xf32>
    %c0_19 = arith.constant 0 : index
    %30 = memref.load %arg5[%c0_19] : memref<2xf32, #tpu.memory_space<smem>>
    %31 = vector.broadcast %30 : f32 to vector<16x128xf32>
    %32 = arith.addf %29, %31 : vector<16x128xf32>
    %c0_20 = arith.constant 0 : index
    %c0_21 = arith.constant 0 : index
    %33 = vector.load %arg6[%c0_20, %c0_21] : memref<16x128xf32, #tpu.memory_space<vmem>>, vector<16x128xf32>
    tpu.vector_store %arg6[%c0_20, %c0_21], %32 {strides = array<i32>} : memref<16x128xf32, #tpu.memory_space<vmem>>, vector<16x128xf32>,
    %34 = vector.extract_strided_slice %28 {offsets = [0, 128], sizes = [16, 128], strides = [1, 1]} : vector<16x256xf32> to vector<16x128xf32>
    %c1_22 = arith.constant 1 : index
    %35 = memref.load %arg5[%c1_22] : memref<2xf32, #tpu.memory_space<smem>>
    %36 = vector.broadcast %35 : f32 to vector<16x128xf32>
    %37 = arith.addf %34, %36 : vector<16x128xf32>
    %c0_23 = arith.constant 0 : index
    %c0_24 = arith.constant 0 : index
    %38 = vector.load %arg7[%c0_23, %c0_24] : memref<16x128xf32, #tpu.memory_space<vmem>>, vector<16x128xf32>
    tpu.vector_store %arg7[%c0_23, %c0_24], %37 {strides = array<i32>} : memref<16x128xf32, #tpu.memory_space<vmem>>, vector<16x128xf32>,
    return
  }
  func.func @transform_0(%arg0: i32) -> (i32, i32) {
    %c0_i32 = arith.constant 0 : i32
    %c0_i32_0 = arith.constant 0 : i32
    return %arg0, %c0_i32 : i32, i32
  }
  func.func @transform_1(%arg0: i32) -> (i32, i32) {
    %c0_i32 = arith.constant 0 : i32
    %c0_i32_0 = arith.constant 0 : i32
    return %arg0, %c0_i32 : i32, i32
  }
  func.func @transform_2(%arg0: i32) -> (i32, i32, i32) {
    %c0_i32 = arith.constant 0 : i32
    %c0_i32_0 = arith.constant 0 : i32
    %c0_i32_1 = arith.constant 0 : i32
    %c0_i32_2 = arith.constant 0 : i32
    return %c0_i32, %c0_i32_0, %c0_i32_1 : i32, i32, i32
  }
  func.func @transform_3(%arg0: i32) -> (i32, i32, i32) {
    %c0_i32 = arith.constant 0 : i32
    %c0_i32_0 = arith.constant 0 : i32
    %c0_i32_1 = arith.constant 0 : i32
    %c0_i32_2 = arith.constant 0 : i32
    return %c0_i32, %c0_i32_0, %c0_i32_1 : i32, i32, i32
  }
  func.func @transform_4(%arg0: i32) -> i32 {
    %c0_i32 = arith.constant 0 : i32
    %c0_i32_0 = arith.constant 0 : i32
    return %c0_i32 : i32
  }
  func.func @transform_5(%arg0: i32) -> (i32, i32) {
    %c0_i32 = arith.constant 0 : i32
    %c0_i32_0 = arith.constant 0 : i32
    return %arg0, %c0_i32 : i32, i32
  }
  func.func @transform_6(%arg0: i32) -> (i32, i32) {
    %c0_i32 = arith.constant 0 : i32
    %c0_i32_0 = arith.constant 0 : i32
    return %arg0, %c0_i32 : i32, i32
  }
}

</mosaic_0001>

<llo_original>
// kernel: tpu_custom_call.1
$region0: #{tpu_custom_call.1}
  #allocation0 [shape = 'u32[]', space=smem, size = 0x4, offset = 0x4, fixed_abs, tag = 'smem constant byte address 0x4 - core index']
  #allocation1 [shape = 'u32[144,128]{1,0:T(1,128)}', space=vmem, size = 0x12000, scoped, tag = 'internal scratch']
  %s0 = inlined_call_operand.hbm [shape: f32[32,128], index: 0, kind: input, shape index: {}]
  %s1 = inlined_call_operand.hbm [shape: f32[32,128], index: 1, kind: input, shape index: {}]
  %s2 = inlined_call_operand.hbm [shape: bf16[2,128,256], index: 2, kind: input, shape index: {}]
  %s3 = inlined_call_operand.hbm [shape: bf16[2,128,256], index: 3, kind: input, shape index: {}]
  %s4 = inlined_call_operand.vmem [shape: f32[2], index: 4, kind: input, shape index: {}]
  %s5 = inlined_call_operand.hbm [shape: f32[32,128], index: 5, kind: output, shape index: {0}]
  %s6 = inlined_call_operand.hbm [shape: f32[32,128], index: 6, kind: output, shape index: {1}]
  %7 = xla_tuple %s5, %s6
  %s8 = sld [smem:[#allocation0]]
  $region81: #{tpu_custom_call.1} parent=0
    _
  %s10 = ssub.s32 1, %s8
  %s11 = scalar_select 0, %s10, %s8
  $region1: #{tpu_custom_call.1} parent=0
    #allocation2 [shape = 'u8[16384]{0}', space=vmem, size = 0x4000, scoped, tag = 'input window, operand 0']
    #allocation3 [shape = 's32[2]{0}', space=sflag, size = 0x8, scoped, tag = 'scoped memory for tpu_custom_call.1']
    #allocation4 [shape = 's32[2]{0}', space=sflag, size = 0x8, scoped, tag = 'scoped memory for tpu_custom_call.1']
    #allocation5 [shape = 's32[2]{0}', space=sflag, size = 0x8, scoped, tag = 'scoped memory for tpu_custom_call.1']
    #allocation6 [shape = 'u8[16384]{0}', space=vmem, size = 0x4000, scoped, tag = 'input window, operand 1']
    #allocation7 [shape = 's32[2]{0}', space=sflag, size = 0x8, scoped, tag = 'scoped memory for tpu_custom_call.1']
    #allocation8 [shape = 'u8[131072]{0}', space=vmem, size = 0x20000, scoped, tag = 'input window, operand 2, single buffered']
    #allocation9 [shape = 'u8[131072]{0}', space=vmem, size = 0x20000, scoped, tag = 'input window, operand 3, single buffered']
    #allocation10 [shape = 's32[1]{0}', space=sflag, size = 0x4, scoped, tag = 'scoped memory for tpu_custom_call.1']
    #allocation11 [shape = 'u8[512]{0}', space=smem, size = 0x200, scoped, tag = 'input window, operand 4, single buffered']
    #allocation12 [shape = 'u8[16384]{0}', space=vmem, size = 0x4000, scoped, tag = 'output window, operand 0']
    #allocation13 [shape = 'u8[16384]{0}', space=vmem, size = 0x4000, scoped, tag = 'output window, operand 1']
    #allocation14 [shape = 's32[2]{0}', space=sflag, size = 0x8, scoped, tag = 'scoped memory for tpu_custom_call.1']
    %12 = vsyncpa [#allocation3], 0
    %s13 = scalar_lea.sflag [#allocation3], 1
    %14 = vsyncpa %s13, 0
    %15 = vsyncpa [#allocation7], 0
    %s16 = scalar_lea.sflag [#allocation7], 1
    %17 = vsyncpa %s16, 0
    %18 = vsyncpa [#allocation10], 0
    %19 = vsyncpa [#allocation5], 0
    %20 = vsyncpa [#allocation4], 0
    %s21 = scalar_lea.sflag [#allocation4], 1
    %22 = vsyncpa %s21, 0
    %23 = vsyncpa [#allocation14], 0
    %s24 = scalar_lea.sflag [#allocation14], 1
    %25 = vsyncpa %s24, 0
    loop: start=0, step=1, limit=4
    $region2: #{tpu_custom_call.1} parent=1 // loop_pre_header
      _
    $region3: #{tpu_custom_call.1} parent=1 // loop_header
      %s27 = sphi 0, %s31
      %p28 = scmp.ge.s32.totalorder %s27, 4
      %s37 = sphi 0, %s39
      %s40 = sphi 0, %s37
      %s41 = sphi 0, %s40
      %s57 = sphi 0, %s41
      %s63 = sphi 0, %s65
      %s66 = sphi 0, %s63
      %s67 = sphi 0, %s66
      %s83 = sphi 0, %s67
      %s87 = sphi 0, %s87
      %s89 = sphi 0, %s87
      %s90 = sphi 0, %s89
      %s104 = sphi 0, %s90
      %s108 = sphi 0, %s108
      %s110 = sphi 0, %s108
      %s111 = sphi 0, %s110
      %s125 = sphi 0, %s111
      %s129 = sphi 0, %s129
      %s131 = sphi 0, %s129
      %s132 = sphi 0, %s131
      %s146 = sphi 0, %s132
      %s152 = sphi 0, %s154
      %s155 = sphi 0, %s152
      %s156 = sphi 0, %s155
      %s172 = sphi 0, %s156
      %s178 = sphi 0, %s180
      %s181 = sphi 0, %s178
      %s182 = sphi 0, %s181
      %s198 = sphi 0, %s182
    $region4: #{tpu_custom_call.1} parent=1 // loop_header_branch
      %30 = sbr.rel (%p28) target = $region8
    $region5: #{tpu_custom_call.1} parent=1 // loop_body
      %s32 = ssub.s32 %s27, 1
      %s33 = ssub.s32 %s27, 2
      %s34 = sadd.s32 %s27, 1
      %s35 = ssub.s32 %s27, %s34
      %p36 = scmp.eq.s32.totalorder %s35, 0
      %s38 = sadd.s32 %s37, 1
      %s39 = scalar_select %p36, %s37, %s38
      %p42 = pneg %p36
      %p43 = scmp.eq.s32.totalorder %s27, 1
      %p44 = por %p42, %p43
      %p45 = scmp.ne.s32.totalorder %s37, %s40
      %p46 = scmp.eq.s32.totalorder %s27, 0
      %p47 = por %p45, %p46
      %p48 = scmp.ne.s32.totalorder %s37, %s40
      %p49 = scmp.eq.s32.totalorder %s32, 1
      %p50 = por %p48, %p49
      %p51 = scmp.ne.s32.totalorder %s40, %s41
      %p52 = scmp.eq.s32.totalorder %s32, 0
      %p53 = por %p51, %p52
      %p54 = scmp.ne.s32.totalorder %s40, %s41
      %p55 = scmp.eq.s32.totalorder %s33, 1
      %p56 = por %p54, %p55
      %p58 = scmp.ne.s32.totalorder %s41, %s57
      %p59 = scmp.eq.s32.totalorder %s33, 0
      %p60 = por %p58, %p59
      %s61 = ssub.s32 %s27, %s34
      %p62 = scmp.eq.s32.totalorder %s61, 0
      %s64 = sadd.s32 %s63, 1
      %s65 = scalar_select %p62, %s63, %s64
      %p68 = pneg %p62
      %p69 = scmp.eq.s32.totalorder %s27, 1
      %p70 = por %p68, %p69
      %p71 = scmp.ne.s32.totalorder %s63, %s66
      %p72 = scmp.eq.s32.totalorder %s27, 0
      %p73 = por %p71, %p72
      %p74 = scmp.ne.s32.totalorder %s63, %s66
      %p75 = scmp.eq.s32.totalorder %s32, 1
      %p76 = por %p74, %p75
      %p77 = scmp.ne.s32.totalorder %s66, %s67
      %p78 = scmp.eq.s32.totalorder %s32, 0
      %p79 = por %p77, %p78
      %p80 = scmp.ne.s32.totalorder %s66, %s67
      %p81 = scmp.eq.s32.totalorder %s33, 1
      %p82 = por %p80, %p81
      %p84 = scmp.ne.s32.totalorder %s67, %s83
      %p85 = scmp.eq.s32.totalorder %s33, 0
      %p86 = por %p84, %p85
      %s88 = sadd.s32 %s87, 1
      %p91 = scmp.eq.s32.totalorder %s27, 1
      %p92 = scmp.ne.s32.totalorder %s87, %s89
      %p93 = scmp.eq.s32.totalorder %s27, 0
      %p94 = por %p92, %p93
      %p95 = scmp.ne.s32.totalorder %s87, %s89
      %p96 = scmp.eq.s32.totalorder %s32, 1
      %p97 = por %p95, %p96
      %p98 = scmp.ne.s32.totalorder %s89, %s90
      %p99 = scmp.eq.s32.totalorder %s32, 0
      %p100 = por %p98, %p99
      %p101 = scmp.ne.s32.totalorder %s89, %s90
      %p102 = scmp.eq.s32.totalorder %s33, 1
      %p103 = por %p101, %p102
      %p105 = scmp.ne.s32.totalorder %s90, %s104
      %p106 = scmp.eq.s32.totalorder %s33, 0
      %p107 = por %p105, %p106
      %s109 = sadd.s32 %s108, 1
      %p112 = scmp.eq.s32.totalorder %s27, 1
      %p113 = scmp.ne.s32.totalorder %s108, %s110
      %p114 = scmp.eq.s32.totalorder %s27, 0
      %p115 = por %p113, %p114
      %p116 = scmp.ne.s32.totalorder %s108, %s110
      %p117 = scmp.eq.s32.totalorder %s32, 1
      %p118 = por %p116, %p117
      %p119 = scmp.ne.s32.totalorder %s110, %s111
      %p120 = scmp.eq.s32.totalorder %s32, 0
      %p121 = por %p119, %p120
      %p122 = scmp.ne.s32.totalorder %s110, %s111
      %p123 = scmp.eq.s32.totalorder %s33, 1
      %p124 = por %p122, %p123
      %p126 = scmp.ne.s32.totalorder %s111, %s125
      %p127 = scmp.eq.s32.totalorder %s33, 0
      %p128 = por %p126, %p127
      %s130 = sadd.s32 %s129, 1
      %p133 = scmp.eq.s32.totalorder %s27, 1
      %p134 = scmp.ne.s32.totalorder %s129, %s131
      %p135 = scmp.eq.s32.totalorder %s27, 0
      %p136 = por %p134, %p135
      %p137 = scmp.ne.s32.totalorder %s129, %s131
      %p138 = scmp.eq.s32.totalorder %s32, 1
      %p139 = por %p137, %p138
      %p140 = scmp.ne.s32.totalorder %s131, %s132
      %p141 = scmp.eq.s32.totalorder %s32, 0
      %p142 = por %p140, %p141
      %p143 = scmp.ne.s32.totalorder %s131, %s132
      %p144 = scmp.eq.s32.totalorder %s33, 1
      %p145 = por %p143, %p144
      %p147 = scmp.ne.s32.totalorder %s132, %s146
      %p148 = scmp.eq.s32.totalorder %s33, 0
      %p149 = por %p147, %p148
      %s150 = ssub.s32 %s27, %s34
      %p151 = scmp.eq.s32.totalorder %s150, 0
      %s153 = sadd.s32 %s152, 1
      %s154 = scalar_select %p151, %s152, %s153
      %p157 = pneg %p151
      %p158 = scmp.eq.s32.totalorder %s27, 1
      %p159 = por %p157, %p158
      %p160 = scmp.ne.s32.totalorder %s152, %s155
      %p161 = scmp.eq.s32.totalorder %s27, 0
      %p162 = por %p160, %p161
      %p163 = scmp.ne.s32.totalorder %s152, %s155
      %p164 = scmp.eq.s32.totalorder %s32, 1
      %p165 = por %p163, %p164
      %p166 = scmp.ne.s32.totalorder %s155, %s156
      %p167 = scmp.eq.s32.totalorder %s32, 0
      %p168 = por %p166, %p167
      %p169 = scmp.ne.s32.totalorder %s155, %s156
      %p170 = scmp.eq.s32.totalorder %s33, 1
      %p171 = por %p169, %p170
      %p173 = scmp.ne.s32.totalorder %s156, %s172
      %p174 = scmp.eq.s32.totalorder %s33, 0
      %p175 = por %p173, %p174
      %s176 = ssub.s32 %s27, %s34
      %p177 = scmp.eq.s32.totalorder %s176, 0
      %s179 = sadd.s32 %s178, 1
      %s180 = scalar_select %p177, %s178, %s179
      %p183 = pneg %p177
      %p184 = scmp.eq.s32.totalorder %s27, 1
      %p185 = por %p183, %p184
      %p186 = scmp.ne.s32.totalorder %s178, %s181
      %p187 = scmp.eq.s32.totalorder %s27, 0
      %p188 = por %p186, %p187
      %p189 = scmp.ne.s32.totalorder %s178, %s181
      %p190 = scmp.eq.s32.totalorder %s32, 1
      %p191 = por %p189, %p190
      %p192 = scmp.ne.s32.totalorder %s181, %s182
      %p193 = scmp.eq.s32.totalorder %s32, 0
      %p194 = por %p192, %p193
      %p195 = scmp.ne.s32.totalorder %s181, %s182
      %p196 = scmp.eq.s32.totalorder %s33, 1
      %p197 = por %p195, %p196
      %p199 = scmp.ne.s32.totalorder %s182, %s198
      %p200 = scmp.eq.s32.totalorder %s33, 0
      %p201 = por %p199, %p200
      %p202 = scmp.le.s32.totalorder 1, %s27
      %p203 = scmp.lt.s32.totalorder %s27, 3
      %p204 = pnand %p202, %p203
      %p205 = pneg %p204
      // Predicated region
      $region9: #{tpu_custom_call.1} parent=5 // pred_check
        _
      $region10: #{tpu_custom_call.1} parent=5 // pred_check_branch
        %207 = sbr.rel (%p204) target = $region12
      $region11: #{tpu_custom_call.1} parent=5 // pred_region
        %s208 = ssub.s32 %s27, 1
        // Predicated region
        $region13: #{tpu_custom_call.1} parent=11 // pred_check
          %p209 = pneg %p100
        $region14: #{tpu_custom_call.1} parent=11 // pred_check_branch
          %211 = sbr.rel (%p209) target = $region16
        $region15: #{tpu_custom_call.1} parent=11 // pred_region
          %s213 = ssub.s32 4096, 4096
          %214 = vsyncadd [#allocation7], %s213
          %s215 = sshll.u32 [#allocation8], 4
          %s216 = int_to_ptr.vmem [resolvable:$true] %s215
          %221 = dma.hbm_to_vmem [thread:$0]  %s2, 4096, %s216, [#allocation7], 128, 128, 8
        $region16: #{tpu_custom_call.1} parent=11 // pred_fallthru
          _
        // Predicated region
        $region17: #{tpu_custom_call.1} parent=11 // pred_check
          %p222 = pneg %p121
        $region18: #{tpu_custom_call.1} parent=11 // pred_check_branch
          %224 = sbr.rel (%p222) target = $region20
        $region19: #{tpu_custom_call.1} parent=11 // pred_region
          %s226 = ssub.s32 4096, 4096
          %227 = vsyncadd [#allocation10], %s226
          %s228 = sshll.u32 [#allocation9], 4
          %s229 = int_to_ptr.vmem [resolvable:$true] %s228
          %234 = dma.hbm_to_vmem [thread:$0]  %s3, 4096, %s229, [#allocation10], 128, 128, 8
        $region20: #{tpu_custom_call.1} parent=11 // pred_fallthru
          _
        // Predicated region
        $region21: #{tpu_custom_call.1} parent=11 // pred_check
          %p235 = pneg %p142
        $region22: #{tpu_custom_call.1} parent=11 // pred_check_branch
          %237 = sbr.rel (%p235) target = $region24
        $region23: #{tpu_custom_call.1} parent=11 // pred_region
          %s239 = ssub.s32 16, 16
          %240 = vsyncadd [#allocation5], %s239
          %s242 = sshll.u32 %s4, 4
          %s243 = int_to_ptr.vmem [resolvable:$true] %s242
          %245 = dma.vmem_to_smem %s243, 16, [#allocation11], [#allocation5]
        $region24: #{tpu_custom_call.1} parent=11 // pred_fallthru
          _
      $region12: #{tpu_custom_call.1} parent=5 // pred_fallthru
        _
      %p246 = scmp.lt.s32.totalorder %s27, 2
      // Predicated region
      $region25: #{tpu_custom_call.1} parent=5 // pred_check
        %p247 = pneg %p246
      $region26: #{tpu_custom_call.1} parent=5 // pred_check_branch
        %249 = sbr.rel (%p247) target = $region28
      $region27: #{tpu_custom_call.1} parent=5 // pred_region
        // Predicated region
        $region29: #{tpu_custom_call.1} parent=27 // pred_check
          %p250 = pneg %p47
        $region30: #{tpu_custom_call.1} parent=27 // pred_check_branch
          %252 = sbr.rel (%p250) target = $region32
        $region31: #{tpu_custom_call.1} parent=27 // pred_region
          %s253 = sand.u32 %s37, 1
          %s254 = scalar_lea.sflag [#allocation3], %s253
          %s255 = sand.u32 %s37, 1
          %s256 = smul.addr %s255, 16
          %s257 = scalar_lea.vmem [#allocation2], %s256
          %s258 = smul.u32 2, %s27
          %s260 = ssub.s32 256, 256
          %261 = vsyncadd %s254, %s260
          %s262 = smul.addr %s258, 128
          %s263 = scalar_lea.hbm %s0, %s262
          %s264 = sshll.u32 %s257, 4
          %s265 = int_to_ptr.vmem [resolvable:$true] %s264
          %270 = dma.hbm_to_vmem [thread:$0]  %s263, 256, %s265, %s254, 128, 128, 8
        $region32: #{tpu_custom_call.1} parent=27 // pred_fallthru
          _
        // Predicated region
        $region33: #{tpu_custom_call.1} parent=27 // pred_check
          %p271 = pneg %p73
        $region34: #{tpu_custom_call.1} parent=27 // pred_check_branch
          %273 = sbr.rel (%p271) target = $region36
        $region35: #{tpu_custom_call.1} parent=27 // pred_region
          %s274 = sand.u32 %s27, 1
          %s275 = scalar_lea.sflag [#allocation7], %s274
          %s276 = sand.u32 %s63, 1
          %s277 = smul.addr %s276, 16
          %s278 = scalar_lea.vmem [#allocation6], %s277
          %s279 = smul.u32 2, %s27
          %s281 = ssub.s32 256, 256
          %282 = vsyncadd %s275, %s281
          %s283 = smul.addr %s279, 128
          %s284 = scalar_lea.hbm %s1, %s283
          %s285 = sshll.u32 %s278, 4
          %s286 = int_to_ptr.vmem [resolvable:$true] %s285
          %291 = dma.hbm_to_vmem [thread:$0]  %s284, 256, %s286, %s275, 128, 128, 8
        $region36: #{tpu_custom_call.1} parent=27 // pred_fallthru
          _
      $region28: #{tpu_custom_call.1} parent=5 // pred_fallthru
        _
      %p292 = scmp.le.s32.totalorder 1, %s27
      %p293 = scmp.lt.s32.totalorder %s27, 3
      %p294 = pnand %p292, %p293
      %p295 = pneg %p294
      // Predicated region
      $region37: #{tpu_custom_call.1} parent=5 // pred_check
        _
      $region38: #{tpu_custom_call.1} parent=5 // pred_check_branch
        %297 = sbr.rel (%p294) target = $region40
      $region39: #{tpu_custom_call.1} parent=5 // pred_region
        %s298 = ssub.s32 %s27, 1
        %s299 = sand.u32 %s40, 1
        %s300 = scalar_lea.sflag [#allocation3], %s299
        %s301 = sand.u32 %s40, 1
        %s302 = smul.addr %s301, 16
        %s303 = scalar_lea.vmem [#allocation2], %s302
        // Predicated region
        $region41: #{tpu_custom_call.1} parent=39 // pred_check
          %p304 = pneg %p53
        $region42: #{tpu_custom_call.1} parent=39 // pred_check_branch
          %306 = sbr.rel (%p304) target = $region44
        $region43: #{tpu_custom_call.1} parent=39 // pred_region
          %307 = dma.done %s300, 256
        $region44: #{tpu_custom_call.1} parent=39 // pred_fallthru
          _
        %s308 = sand.u32 %s32, 1
        %s309 = scalar_lea.sflag [#allocation7], %s308
        %s310 = sand.u32 %s66, 1
        %s311 = smul.addr %s310, 16
        %s312 = scalar_lea.vmem [#allocation6], %s311
        // Predicated region
        $region45: #{tpu_custom_call.1} parent=39 // pred_check
          %p313 = pneg %p79
        $region46: #{tpu_custom_call.1} parent=39 // pred_check_branch
          %315 = sbr.rel (%p313) target = $region48
        $region47: #{tpu_custom_call.1} parent=39 // pred_region
          %316 = dma.done %s309, 256
        $region48: #{tpu_custom_call.1} parent=39 // pred_fallthru
          _
        // Predicated region
        $region49: #{tpu_custom_call.1} parent=39 // pred_check
          %p317 = pneg %p100
        $region50: #{tpu_custom_call.1} parent=39 // pred_check_branch
          %319 = sbr.rel (%p317) target = $region52
        $region51: #{tpu_custom_call.1} parent=39 // pred_region
          %320 = dma.done [#allocation7], 4096
        $region52: #{tpu_custom_call.1} parent=39 // pred_fallthru
          _
        // Predicated region
        $region53: #{tpu_custom_call.1} parent=39 // pred_check
          %p321 = pneg %p121
        $region54: #{tpu_custom_call.1} parent=39 // pred_check_branch
          %323 = sbr.rel (%p321) target = $region56
        $region55: #{tpu_custom_call.1} parent=39 // pred_region
          %324 = dma.done [#allocation10], 4096
        $region56: #{tpu_custom_call.1} parent=39 // pred_fallthru
          _
        // Predicated region
        $region57: #{tpu_custom_call.1} parent=39 // pred_check
          %p325 = pneg %p142
        $region58: #{tpu_custom_call.1} parent=39 // pred_check_branch
          %327 = sbr.rel (%p325) target = $region60
        $region59: #{tpu_custom_call.1} parent=39 // pred_region
          %328 = dma.done [#allocation5], 16
        $region60: #{tpu_custom_call.1} parent=39 // pred_fallthru
          _
        %329 = sfence
        %s330 = sand.u32 %s40, 1
        %s331 = scalar_lea.sflag [#allocation3], %s330
        %s332 = sand.u32 %s40, 1
        %s333 = smul.addr %s332, 16
        %s334 = scalar_lea.vmem [#allocation2], %s333
        %p335 = pneg %p53
        %p336 = pneg %p50
        %s337 = sand.u32 %s32, 1
        %s338 = scalar_lea.sflag [#allocation7], %s337
        %s339 = sand.u32 %s66, 1
        %s340 = smul.addr %s339, 16
        %s341 = scalar_lea.vmem [#allocation6], %s340
        %p342 = pneg %p79
        %p343 = pneg %p76
        %p344 = pneg %p100
        %p345 = pneg %p97
        %p346 = pneg %p121
        %p347 = pneg %p118
        %p348 = pneg %p142
        %p349 = pneg %p139
        %p350 = pneg %p168
        %p351 = pneg %p165
        %s352 = sand.u32 %s155, 1
        %s353 = scalar_lea.sflag [#allocation4], %s352
        %s354 = sand.u32 %s155, 1
        %s355 = smul.addr %s354, 16
        %s356 = scalar_lea.vmem [#allocation12], %s355
        %p357 = pneg %p194
        %p358 = pneg %p191
        %s359 = sand.u32 %s181, 1
        %s360 = scalar_lea.sflag [#allocation14], %s359
        %s361 = sand.u32 %s181, 1
        %s362 = smul.addr %s361, 16
        %s363 = scalar_lea.vmem [#allocation13], %s362
        %s364 = smul.u32 2, %s32
        %s365 = smul.u32 2, %s32
        %s366 = smul.u32 2, %s32
        %s367 = smul.u32 2, %s32
        %v369 = vld [vmem:[%s303] sm:$0xff]
        %v370 = vld [vmem:[%s303 + $0x8] sm:$0xff]
        %v371 = vld [vmem:[%s312] sm:$0xff]
        %v372 = vld [vmem:[%s312 + $0x8] sm:$0xff]
        %v373 = vpack.c.bf16 %v370, %v369
        %v374 = vunpack.c.l.bf16 %v373
        %v375 = vunpack.c.h.bf16 %v373
        %v376 = vsub.f32 %v369, %v374
        %v377 = vsub.f32 %v370, %v375
        %v378 = vpack.c.bf16 %v377, %v376
        %v379 = vpack.c.bf16 %v372, %v371
        %v380 = vunpack.c.l.bf16 %v379
        %v381 = vunpack.c.h.bf16 %v379
        %v382 = vsub.f32 %v371, %v380
        %v383 = vsub.f32 %v372, %v381
        %v384 = vpack.c.bf16 %v383, %v382
        %v385 = vld [vmem:[#allocation8] sm:$0xff]
        %v386 = vld [vmem:[#allocation8 + $0x8] sm:$0xff]
        %v387 = vld [vmem:[#allocation8 + $0x10] sm:$0xff]
        %v388 = vld [vmem:[#allocation8 + $0x18] sm:$0xff]
        %v389 = vld [vmem:[#allocation8 + $0x20] sm:$0xff]
        %v390 = vld [vmem:[#allocation8 + $0x28] sm:$0xff]
        %v391 = vld [vmem:[#allocation8 + $0x30] sm:$0xff]
        %v392 = vld [vmem:[#allocation8 + $0x38] sm:$0xff]
        %v393 = vld [vmem:[#allocation8 + $0x40] sm:$0xff]
        %v394 = vld [vmem:[#allocation8 + $0x48] sm:$0xff]
        %v395 = vld [vmem:[#allocation8 + $0x50] sm:$0xff]
        %v396 = vld [vmem:[#allocation8 + $0x58] sm:$0xff]
        %v397 = vld [vmem:[#allocation8 + $0x60] sm:$0xff]
        %v398 = vld [vmem:[#allocation8 + $0x68] sm:$0xff]
        %v399 = vld [vmem:[#allocation8 + $0x70] sm:$0xff]
        %v400 = vld [vmem:[#allocation8 + $0x78] sm:$0xff]
        %s401 = scalar_lea.vmem [#allocation8], 128
        %v402 = vld [vmem:[%s401] sm:$0xff]
        %v403 = vld [vmem:[%s401 + $0x8] sm:$0xff]
        %v404 = vld [vmem:[%s401 + $0x10] sm:$0xff]
        %v405 = vld [vmem:[%s401 + $0x18] sm:$0xff]
        %v406 = vld [vmem:[%s401 + $0x20] sm:$0xff]
        %v407 = vld [vmem:[%s401 + $0x28] sm:$0xff]
        %v408 = vld [vmem:[%s401 + $0x30] sm:$0xff]
        %v409 = vld [vmem:[%s401 + $0x38] sm:$0xff]
        %v410 = vld [vmem:[%s401 + $0x40] sm:$0xff]
        %v411 = vld [vmem:[%s401 + $0x48] sm:$0xff]
        %v412 = vld [vmem:[%s401 + $0x50] sm:$0xff]
        %v413 = vld [vmem:[%s401 + $0x58] sm:$0xff]
        %v414 = vld [vmem:[%s401 + $0x60] sm:$0xff]
        %v415 = vld [vmem:[%s401 + $0x68] sm:$0xff]
        %v416 = vld [vmem:[%s401 + $0x70] sm:$0xff]
        %v417 = vld [vmem:[%s401 + $0x78] sm:$0xff]
        %v418 = vld [vmem:[#allocation9] sm:$0xff]
        %v419 = vld [vmem:[#allocation9 + $0x8] sm:$0xff]
        %v420 = vld [vmem:[#allocation9 + $0x10] sm:$0xff]
        %v421 = vld [vmem:[#allocation9 + $0x18] sm:$0xff]
        %v422 = vld [vmem:[#allocation9 + $0x20] sm:$0xff]
        %v423 = vld [vmem:[#allocation9 + $0x28] sm:$0xff]
        %v424 = vld [vmem:[#allocation9 + $0x30] sm:$0xff]
        %v425 = vld [vmem:[#allocation9 + $0x38] sm:$0xff]
        %v426 = vld [vmem:[#allocation9 + $0x40] sm:$0xff]
        %v427 = vld [vmem:[#allocation9 + $0x48] sm:$0xff]
        %v428 = vld [vmem:[#allocation9 + $0x50] sm:$0xff]
        %v429 = vld [vmem:[#allocation9 + $0x58] sm:$0xff]
        %v430 = vld [vmem:[#allocation9 + $0x60] sm:$0xff]
        %v431 = vld [vmem:[#allocation9 + $0x68] sm:$0xff]
        %v432 = vld [vmem:[#allocation9 + $0x70] sm:$0xff]
        %v433 = vld [vmem:[#allocation9 + $0x78] sm:$0xff]
        %s434 = scalar_lea.vmem [#allocation9], 128
        %v435 = vld [vmem:[%s434] sm:$0xff]
        %v436 = vld [vmem:[%s434 + $0x8] sm:$0xff]
        %v437 = vld [vmem:[%s434 + $0x10] sm:$0xff]
        %v438 = vld [vmem:[%s434 + $0x18] sm:$0xff]
        %v439 = vld [vmem:[%s434 + $0x20] sm:$0xff]
        %v440 = vld [vmem:[%s434 + $0x28] sm:$0xff]
        %v441 = vld [vmem:[%s434 + $0x30] sm:$0xff]
        %v442 = vld [vmem:[%s434 + $0x38] sm:$0xff]
        %v443 = vld [vmem:[%s434 + $0x40] sm:$0xff]
        %v444 = vld [vmem:[%s434 + $0x48] sm:$0xff]
        %v445 = vld [vmem:[%s434 + $0x50] sm:$0xff]
        %v446 = vld [vmem:[%s434 + $0x58] sm:$0xff]
        %v447 = vld [vmem:[%s434 + $0x60] sm:$0xff]
        %v448 = vld [vmem:[%s434 + $0x68] sm:$0xff]
        %v449 = vld [vmem:[%s434 + $0x70] sm:$0xff]
        %v450 = vld [vmem:[%s434 + $0x78] sm:$0xff]
        %v467 = vunpack.c.l.b16 %v402
        %v468 = vunpack.c.h.b16 %v402
        %v469 = vunpack.c.l.b16 %v403
        %v470 = vunpack.c.h.b16 %v403
        %v471 = vunpack.c.l.b16 %v404
        %v472 = vunpack.c.h.b16 %v404
        %v473 = vunpack.c.l.b16 %v405
        %v474 = vunpack.c.h.b16 %v405
        %v475 = vunpack.c.l.b16 %v406
        %v476 = vunpack.c.h.b16 %v406
        %v477 = vunpack.c.l.b16 %v407
        %v478 = vunpack.c.h.b16 %v407
        %v479 = vunpack.c.l.b16 %v408
        %v480 = vunpack.c.h.b16 %v408
        %v481 = vunpack.c.l.b16 %v409
        %v482 = vunpack.c.h.b16 %v409
        %v483 = vunpack.c.l.b16 %v410
        %v484 = vunpack.c.h.b16 %v410
        %v485 = vunpack.c.l.b16 %v411
        %v486 = vunpack.c.h.b16 %v411
        %v487 = vunpack.c.l.b16 %v412
        %v488 = vunpack.c.h.b16 %v412
        %v489 = vunpack.c.l.b16 %v413
        %v490 = vunpack.c.h.b16 %v413
        %v491 = vunpack.c.l.b16 %v414
        %v492 = vunpack.c.h.b16 %v414
        %v493 = vunpack.c.l.b16 %v415
        %v494 = vunpack.c.h.b16 %v415
        %v495 = vunpack.c.l.b16 %v416
        %v496 = vunpack.c.h.b16 %v416
        %v497 = vunpack.c.l.b16 %v417
        %v498 = vunpack.c.h.b16 %v417
        %v499 = vpack.c.b16 %v469, %v467
        %v500 = vpack.c.b16 %v470, %v468
        %v501 = vpack.c.b16 %v473, %v471
        %v502 = vpack.c.b16 %v474, %v472
        %v503 = vpack.c.b16 %v477, %v475
        %v504 = vpack.c.b16 %v478, %v476
        %v505 = vpack.c.b16 %v481, %v479
        %v506 = vpack.c.b16 %v482, %v480
        %v507 = vpack.c.b16 %v485, %v483
        %v508 = vpack.c.b16 %v486, %v484
        %v509 = vpack.c.b16 %v489, %v487
        %v510 = vpack.c.b16 %v490, %v488
        %v511 = vpack.c.b16 %v493, %v491
        %v512 = vpack.c.b16 %v494, %v492
        %v513 = vpack.c.b16 %v497, %v495
        %v514 = vpack.c.b16 %v498, %v496
        %531 = vmatprep.subr.bf16.mxu0 %v500
        %532 = vmatpush1.bf16.msra.mxu0 %v499
        %533 = vmatprep.subr.bf16.mxu0 %v502
        %534 = vmatpush1.bf16.msra.mxu0 %v501
        %535 = vmatprep.subr.bf16.mxu0 %v504
        %536 = vmatpush1.bf16.msra.mxu0 %v503
        %537 = vmatprep.subr.bf16.mxu0 %v506
        %538 = vmatpush1.bf16.msra.mxu0 %v505
        %539 = vmatprep.subr.bf16.mxu0 %v508
        %540 = vmatpush1.bf16.msra.mxu0 %v507
        %541 = vmatprep.subr.bf16.mxu0 %v510
        %542 = vmatpush1.bf16.msra.mxu0 %v509
        %543 = vmatprep.subr.bf16.mxu0 %v512
        %544 = vmatpush1.bf16.msra.mxu0 %v511
        %545 = vmatprep.subr.bf16.mxu0 %v514
        %546 = vmatpush1.bf16.msra.mxu0 %v513
        %547 = vmatprep.subr.bf16.mxu0 0
        %548 = vmatpush1.bf16.msra.mxu0 0
        %549 = vmatprep.subr.bf16.mxu0 0
        %550 = vmatpush1.bf16.msra.mxu0 0
        %551 = vmatprep.subr.bf16.mxu0 0
        %552 = vmatpush1.bf16.msra.mxu0 0
        %553 = vmatprep.subr.bf16.mxu0 0
        %554 = vmatpush1.bf16.msra.mxu0 0
        %555 = vmatprep.subr.bf16.mxu0 0
        %556 = vmatpush1.bf16.msra.mxu0 0
        %557 = vmatprep.subr.bf16.mxu0 0
        %558 = vmatpush1.bf16.msra.mxu0 0
        %559 = vmatprep.subr.bf16.mxu0 0
        %560 = vmatpush1.bf16.msra.mxu0 0
        %561 = vmatprep.subr.bf16.mxu0 0
        %562 = vmatpush1.bf16.msra.mxu0 0
        %563 = vmatprep.mubr.bf16.mxu0 0
        %564 = vmatmul.mubr.bf16.gmra.mrb[0].mxu0 %v379
        %v565 = vpop.f32.mrb[0].mxu0
        %v566 = vadd.f32 0.0, %v565
        %v567 = vpop.f32.mrb[0].mxu0
        %v568 = vadd.f32 0.0, %v567
        %v569 = vpop.f32.mrb[0].mxu0
        %v570 = vadd.f32 0.0, %v569
        %v571 = vpop.f32.mrb[0].mxu0
        %v572 = vadd.f32 0.0, %v571
        %573 = vdwg.mxu0
        %v590 = vunpack.c.l.b16 %v385
        %v591 = vunpack.c.h.b16 %v385
        %v592 = vunpack.c.l.b16 %v386
        %v593 = vunpack.c.h.b16 %v386
        %v594 = vunpack.c.l.b16 %v387
        %v595 = vunpack.c.h.b16 %v387
        %v596 = vunpack.c.l.b16 %v388
        %v597 = vunpack.c.h.b16 %v388
        %v598 = vunpack.c.l.b16 %v389
        %v599 = vunpack.c.h.b16 %v389
        %v600 = vunpack.c.l.b16 %v390
        %v601 = vunpack.c.h.b16 %v390
        %v602 = vunpack.c.l.b16 %v391
        %v603 = vunpack.c.h.b16 %v391
        %v604 = vunpack.c.l.b16 %v392
        %v605 = vunpack.c.h.b16 %v392
        %v606 = vunpack.c.l.b16 %v393
        %v607 = vunpack.c.h.b16 %v393
        %v608 = vunpack.c.l.b16 %v394
        %v609 = vunpack.c.h.b16 %v394
        %v610 = vunpack.c.l.b16 %v395
        %v611 = vunpack.c.h.b16 %v395
        %v612 = vunpack.c.l.b16 %v396
        %v613 = vunpack.c.h.b16 %v396
        %v614 = vunpack.c.l.b16 %v397
        %v615 = vunpack.c.h.b16 %v397
        %v616 = vunpack.c.l.b16 %v398
        %v617 = vunpack.c.h.b16 %v398
        %v618 = vunpack.c.l.b16 %v399
        %v619 = vunpack.c.h.b16 %v399
        %v620 = vunpack.c.l.b16 %v400
        %v621 = vunpack.c.h.b16 %v400
        %v622 = vpack.c.b16 %v592, %v590
        %v623 = vpack.c.b16 %v593, %v591
        %v624 = vpack.c.b16 %v596, %v594
        %v625 = vpack.c.b16 %v597, %v595
        %v626 = vpack.c.b16 %v600, %v598
        %v627 = vpack.c.b16 %v601, %v599
        %v628 = vpack.c.b16 %v604, %v602
        %v629 = vpack.c.b16 %v605, %v603
        %v630 = vpack.c.b16 %v608, %v606
        %v631 = vpack.c.b16 %v609, %v607
        %v632 = vpack.c.b16 %v612, %v610
        %v633 = vpack.c.b16 %v613, %v611
        %v634 = vpack.c.b16 %v616, %v614
        %v635 = vpack.c.b16 %v617, %v615
        %v636 = vpack.c.b16 %v620, %v618
        %v637 = vpack.c.b16 %v621, %v619
        %654 = vmatprep.subr.bf16.mxu0 %v623
        %655 = vmatpush1.bf16.msra.mxu0 %v622
        %656 = vmatprep.subr.bf16.mxu0 %v625
        %657 = vmatpush1.bf16.msra.mxu0 %v624
        %658 = vmatprep.subr.bf16.mxu0 %v627
        %659 = vmatpush1.bf16.msra.mxu0 %v626
        %660 = vmatprep.subr.bf16.mxu0 %v629
        %661 = vmatpush1.bf16.msra.mxu0 %v628
        %662 = vmatprep.subr.bf16.mxu0 %v631
        %663 = vmatpush1.bf16.msra.mxu0 %v630
        %664 = vmatprep.subr.bf16.mxu0 %v633
        %665 = vmatpush1.bf16.msra.mxu0 %v632
        %666 = vmatprep.subr.bf16.mxu0 %v635
        %667 = vmatpush1.bf16.msra.mxu0 %v634
        %668 = vmatprep.subr.bf16.mxu0 %v637
        %669 = vmatpush1.bf16.msra.mxu0 %v636
        %670 = vmatprep.subr.bf16.mxu0 0
        %671 = vmatpush1.bf16.msra.mxu0 0
        %672 = vmatprep.subr.bf16.mxu0 0
        %673 = vmatpush1.bf16.msra.mxu0 0
        %674 = vmatprep.subr.bf16.mxu0 0
        %675 = vmatpush1.bf16.msra.mxu0 0
        %676 = vmatprep.subr.bf16.mxu0 0
        %677 = vmatpush1.bf16.msra.mxu0 0
        %678 = vmatprep.subr.bf16.mxu0 0
        %679 = vmatpush1.bf16.msra.mxu0 0
        %680 = vmatprep.subr.bf16.mxu0 0
        %681 = vmatpush1.bf16.msra.mxu0 0
        %682 = vmatprep.subr.bf16.mxu0 0
        %683 = vmatpush1.bf16.msra.mxu0 0
        %684 = vmatprep.subr.bf16.mxu0 0
        %685 = vmatpush1.bf16.msra.mxu0 0
        %686 = vmatprep.mubr.bf16.mxu0 0
        %687 = vmatmul.mubr.bf16.gmra.mrb[0].mxu0 %v373
        %v688 = vpop.f32.mrb[0].mxu0
        %v689 = vadd.f32 %v566, %v688
        %v690 = vpop.f32.mrb[0].mxu0
        %v691 = vadd.f32 %v568, %v690
        %v692 = vpop.f32.mrb[0].mxu0
        %v693 = vadd.f32 %v570, %v692
        %v694 = vpop.f32.mrb[0].mxu0
        %v695 = vadd.f32 %v572, %v694
        %696 = vdwg.mxu0
        %v713 = vunpack.c.l.b16 %v418
        %v714 = vunpack.c.h.b16 %v418
        %v715 = vunpack.c.l.b16 %v419
        %v716 = vunpack.c.h.b16 %v419
        %v717 = vunpack.c.l.b16 %v420
        %v718 = vunpack.c.h.b16 %v420
        %v719 = vunpack.c.l.b16 %v421
        %v720 = vunpack.c.h.b16 %v421
        %v721 = vunpack.c.l.b16 %v422
        %v722 = vunpack.c.h.b16 %v422
        %v723 = vunpack.c.l.b16 %v423
        %v724 = vunpack.c.h.b16 %v423
        %v725 = vunpack.c.l.b16 %v424
        %v726 = vunpack.c.h.b16 %v424
        %v727 = vunpack.c.l.b16 %v425
        %v728 = vunpack.c.h.b16 %v425
        %v729 = vunpack.c.l.b16 %v426
        %v730 = vunpack.c.h.b16 %v426
        %v731 = vunpack.c.l.b16 %v427
        %v732 = vunpack.c.h.b16 %v427
        %v733 = vunpack.c.l.b16 %v428
        %v734 = vunpack.c.h.b16 %v428
        %v735 = vunpack.c.l.b16 %v429
        %v736 = vunpack.c.h.b16 %v429
        %v737 = vunpack.c.l.b16 %v430
        %v738 = vunpack.c.h.b16 %v430
        %v739 = vunpack.c.l.b16 %v431
        %v740 = vunpack.c.h.b16 %v431
        %v741 = vunpack.c.l.b16 %v432
        %v742 = vunpack.c.h.b16 %v432
        %v743 = vunpack.c.l.b16 %v433
        %v744 = vunpack.c.h.b16 %v433
        %v745 = vpack.c.b16 %v715, %v713
        %v746 = vpack.c.b16 %v716, %v714
        %v747 = vpack.c.b16 %v719, %v717
        %v748 = vpack.c.b16 %v720, %v718
        %v749 = vpack.c.b16 %v723, %v721
        %v750 = vpack.c.b16 %v724, %v722
        %v751 = vpack.c.b16 %v727, %v725
        %v752 = vpack.c.b16 %v728, %v726
        %v753 = vpack.c.b16 %v731, %v729
        %v754 = vpack.c.b16 %v732, %v730
        %v755 = vpack.c.b16 %v735, %v733
        %v756 = vpack.c.b16 %v736, %v734
        %v757 = vpack.c.b16 %v739, %v737
        %v758 = vpack.c.b16 %v740, %v738
        %v759 = vpack.c.b16 %v743, %v741
        %v760 = vpack.c.b16 %v744, %v742
        %777 = vmatprep.subr.bf16.mxu0 %v746
        %778 = vmatpush1.bf16.msra.mxu0 %v745
        %779 = vmatprep.subr.bf16.mxu0 %v748
        %780 = vmatpush1.bf16.msra.mxu0 %v747
        %781 = vmatprep.subr.bf16.mxu0 %v750
        %782 = vmatpush1.bf16.msra.mxu0 %v749
        %783 = vmatprep.subr.bf16.mxu0 %v752
        %784 = vmatpush1.bf16.msra.mxu0 %v751
        %785 = vmatprep.subr.bf16.mxu0 %v754
        %786 = vmatpush1.bf16.msra.mxu0 %v753
        %787 = vmatprep.subr.bf16.mxu0 %v756
        %788 = vmatpush1.bf16.msra.mxu0 %v755
        %789 = vmatprep.subr.bf16.mxu0 %v758
        %790 = vmatpush1.bf16.msra.mxu0 %v757
        %791 = vmatprep.subr.bf16.mxu0 %v760
        %792 = vmatpush1.bf16.msra.mxu0 %v759
        %793 = vmatprep.subr.bf16.mxu0 0
        %794 = vmatpush1.bf16.msra.mxu0 0
        %795 = vmatprep.subr.bf16.mxu0 0
        %796 = vmatpush1.bf16.msra.mxu0 0
        %797 = vmatprep.subr.bf16.mxu0 0
        %798 = vmatpush1.bf16.msra.mxu0 0
        %799 = vmatprep.subr.bf16.mxu0 0
        %800 = vmatpush1.bf16.msra.mxu0 0
        %801 = vmatprep.subr.bf16.mxu0 0
        %802 = vmatpush1.bf16.msra.mxu0 0
        %803 = vmatprep.subr.bf16.mxu0 0
        %804 = vmatpush1.bf16.msra.mxu0 0
        %805 = vmatprep.subr.bf16.mxu0 0
        %806 = vmatpush1.bf16.msra.mxu0 0
        %807 = vmatprep.subr.bf16.mxu0 0
        %808 = vmatpush1.bf16.msra.mxu0 0
        %809 = vmatprep.mubr.bf16.mxu0 0
        %810 = vmatmul.mubr.bf16.gmra.mrb[0].mxu0 %v373
        %v811 = vpop.f32.mrb[0].mxu0
        %v812 = vadd.f32 0.0, %v811
        %v813 = vpop.f32.mrb[0].mxu0
        %v814 = vadd.f32 0.0, %v813
        %v815 = vpop.f32.mrb[0].mxu0
        %v816 = vadd.f32 0.0, %v815
        %v817 = vpop.f32.mrb[0].mxu0
        %v818 = vadd.f32 0.0, %v817
        %819 = vdwg.mxu0
        %v820 = vadd.f32 %v689, %v812
        %v821 = vadd.f32 %v691, %v814
        %v822 = vadd.f32 %v693, %v816
        %v823 = vadd.f32 %v695, %v818
        %v840 = vunpack.c.l.b16 %v435
        %v841 = vunpack.c.h.b16 %v435
        %v842 = vunpack.c.l.b16 %v436
        %v843 = vunpack.c.h.b16 %v436
        %v844 = vunpack.c.l.b16 %v437
        %v845 = vunpack.c.h.b16 %v437
        %v846 = vunpack.c.l.b16 %v438
        %v847 = vunpack.c.h.b16 %v438
        %v848 = vunpack.c.l.b16 %v439
        %v849 = vunpack.c.h.b16 %v439
        %v850 = vunpack.c.l.b16 %v440
        %v851 = vunpack.c.h.b16 %v440
        %v852 = vunpack.c.l.b16 %v441
        %v853 = vunpack.c.h.b16 %v441
        %v854 = vunpack.c.l.b16 %v442
        %v855 = vunpack.c.h.b16 %v442
        %v856 = vunpack.c.l.b16 %v443
        %v857 = vunpack.c.h.b16 %v443
        %v858 = vunpack.c.l.b16 %v444
        %v859 = vunpack.c.h.b16 %v444
        %v860 = vunpack.c.l.b16 %v445
        %v861 = vunpack.c.h.b16 %v445
        %v862 = vunpack.c.l.b16 %v446
        %v863 = vunpack.c.h.b16 %v446
        %v864 = vunpack.c.l.b16 %v447
        %v865 = vunpack.c.h.b16 %v447
        %v866 = vunpack.c.l.b16 %v448
        %v867 = vunpack.c.h.b16 %v448
        %v868 = vunpack.c.l.b16 %v449
        %v869 = vunpack.c.h.b16 %v449
        %v870 = vunpack.c.l.b16 %v450
        %v871 = vunpack.c.h.b16 %v450
        %v872 = vpack.c.b16 %v842, %v840
        %v873 = vpack.c.b16 %v843, %v841
        %v874 = vpack.c.b16 %v846, %v844
        %v875 = vpack.c.b16 %v847, %v845
        %v876 = vpack.c.b16 %v850, %v848
        %v877 = vpack.c.b16 %v851, %v849
        %v878 = vpack.c.b16 %v854, %v852
        %v879 = vpack.c.b16 %v855, %v853
        %v880 = vpack.c.b16 %v858, %v856
        %v881 = vpack.c.b16 %v859, %v857
        %v882 = vpack.c.b16 %v862, %v860
        %v883 = vpack.c.b16 %v863, %v861
        %v884 = vpack.c.b16 %v866, %v864
        %v885 = vpack.c.b16 %v867, %v865
        %v886 = vpack.c.b16 %v870, %v868
        %v887 = vpack.c.b16 %v871, %v869
        %904 = vmatprep.subr.bf16.mxu0 %v873
        %905 = vmatpush1.bf16.msra.mxu0 %v872
        %906 = vmatprep.subr.bf16.mxu0 %v875
        %907 = vmatpush1.bf16.msra.mxu0 %v874
        %908 = vmatprep.subr.bf16.mxu0 %v877
        %909 = vmatpush1.bf16.msra.mxu0 %v876
        %910 = vmatprep.subr.bf16.mxu0 %v879
        %911 = vmatpush1.bf16.msra.mxu0 %v878
        %912 = vmatprep.subr.bf16.mxu0 %v881
        %913 = vmatpush1.bf16.msra.mxu0 %v880
        %914 = vmatprep.subr.bf16.mxu0 %v883
        %915 = vmatpush1.bf16.msra.mxu0 %v882
        %916 = vmatprep.subr.bf16.mxu0 %v885
        %917 = vmatpush1.bf16.msra.mxu0 %v884
        %918 = vmatprep.subr.bf16.mxu0 %v887
        %919 = vmatpush1.bf16.msra.mxu0 %v886
        %920 = vmatprep.subr.bf16.mxu0 0
        %921 = vmatpush1.bf16.msra.mxu0 0
        %922 = vmatprep.subr.bf16.mxu0 0
        %923 = vmatpush1.bf16.msra.mxu0 0
        %924 = vmatprep.subr.bf16.mxu0 0
        %925 = vmatpush1.bf16.msra.mxu0 0
        %926 = vmatprep.subr.bf16.mxu0 0
        %927 = vmatpush1.bf16.msra.mxu0 0
        %928 = vmatprep.subr.bf16.mxu0 0
        %929 = vmatpush1.bf16.msra.mxu0 0
        %930 = vmatprep.subr.bf16.mxu0 0
        %931 = vmatpush1.bf16.msra.mxu0 0
        %932 = vmatprep.subr.bf16.mxu0 0
        %933 = vmatpush1.bf16.msra.mxu0 0
        %934 = vmatprep.subr.bf16.mxu0 0
        %935 = vmatpush1.bf16.msra.mxu0 0
        %936 = vmatprep.mubr.bf16.mxu0 0
        %937 = vmatmul.mubr.bf16.gmra.mrb[0].mxu0 %v379
        %v938 = vpop.f32.mrb[0].mxu0
        %v939 = vadd.f32 0.0, %v938
        %v940 = vpop.f32.mrb[0].mxu0
        %v941 = vadd.f32 0.0, %v940
        %v942 = vpop.f32.mrb[0].mxu0
        %v943 = vadd.f32 0.0, %v942
        %v944 = vpop.f32.mrb[0].mxu0
        %v945 = vadd.f32 0.0, %v944
        %946 = vdwg.mxu0
        %v947 = vadd.f32 %v820, %v939
        %v948 = vadd.f32 %v821, %v941
        %v949 = vadd.f32 %v822, %v943
        %v950 = vadd.f32 %v823, %v945
        %951 = vmatprep.subr.bf16.mxu0 %v623
        %952 = vmatpush1.bf16.msra.mxu0 %v622
        %953 = vmatprep.subr.bf16.mxu0 %v625
        %954 = vmatpush1.bf16.msra.mxu0 %v624
        %955 = vmatprep.subr.bf16.mxu0 %v627
        %956 = vmatpush1.bf16.msra.mxu0 %v626
        %957 = vmatprep.subr.bf16.mxu0 %v629
        %958 = vmatpush1.bf16.msra.mxu0 %v628
        %959 = vmatprep.subr.bf16.mxu0 %v631
        %960 = vmatpush1.bf16.msra.mxu0 %v630
        %961 = vmatprep.subr.bf16.mxu0 %v633
        %962 = vmatpush1.bf16.msra.mxu0 %v632
        %963 = vmatprep.subr.bf16.mxu0 %v635
        %964 = vmatpush1.bf16.msra.mxu0 %v634
        %965 = vmatprep.subr.bf16.mxu0 %v637
        %966 = vmatpush1.bf16.msra.mxu0 %v636
        %967 = vmatprep.subr.bf16.mxu0 0
        %968 = vmatpush1.bf16.msra.mxu0 0
        %969 = vmatprep.subr.bf16.mxu0 0
        %970 = vmatpush1.bf16.msra.mxu0 0
        %971 = vmatprep.subr.bf16.mxu0 0
        %972 = vmatpush1.bf16.msra.mxu0 0
        %973 = vmatprep.subr.bf16.mxu0 0
        %974 = vmatpush1.bf16.msra.mxu0 0
        %975 = vmatprep.subr.bf16.mxu0 0
        %976 = vmatpush1.bf16.msra.mxu0 0
        %977 = vmatprep.subr.bf16.mxu0 0
        %978 = vmatpush1.bf16.msra.mxu0 0
        %979 = vmatprep.subr.bf16.mxu0 0
        %980 = vmatpush1.bf16.msra.mxu0 0
        %981 = vmatprep.subr.bf16.mxu0 0
        %982 = vmatpush1.bf16.msra.mxu0 0
        %983 = vmatprep.mubr.bf16.mxu0 0
        %984 = vmatmul.mubr.bf16.gmra.mrb[0].mxu0 %v378
        %v985 = vpop.f32.mrb[0].mxu0
        %v986 = vadd.f32 0.0, %v985
        %v987 = vpop.f32.mrb[0].mxu0
        %v988 = vadd.f32 0.0, %v987
        %v989 = vpop.f32.mrb[0].mxu0
        %v990 = vadd.f32 0.0, %v989
        %v991 = vpop.f32.mrb[0].mxu0
        %v992 = vadd.f32 0.0, %v991
        %993 = vdwg.mxu0
        %v994 = vadd.f32 %v947, %v986
        %v995 = vadd.f32 %v948, %v988
        %v996 = vadd.f32 %v949, %v990
        %v997 = vadd.f32 %v950, %v992
        %998 = vmatprep.subr.bf16.mxu0 %v500
        %999 = vmatpush1.bf16.msra.mxu0 %v499
        %1000 = vmatprep.subr.bf16.mxu0 %v502
        %1001 = vmatpush1.bf16.msra.mxu0 %v501
        %1002 = vmatprep.subr.bf16.mxu0 %v504
        %1003 = vmatpush1.bf16.msra.mxu0 %v503
        %1004 = vmatprep.subr.bf16.mxu0 %v506
        %1005 = vmatpush1.bf16.msra.mxu0 %v505
        %1006 = vmatprep.subr.bf16.mxu0 %v508
        %1007 = vmatpush1.bf16.msra.mxu0 %v507
        %1008 = vmatprep.subr.bf16.mxu0 %v510
        %1009 = vmatpush1.bf16.msra.mxu0 %v509
        %1010 = vmatprep.subr.bf16.mxu0 %v512
        %1011 = vmatpush1.bf16.msra.mxu0 %v511
        %1012 = vmatprep.subr.bf16.mxu0 %v514
        %1013 = vmatpush1.bf16.msra.mxu0 %v513
        %1014 = vmatprep.subr.bf16.mxu0 0
        %1015 = vmatpush1.bf16.msra.mxu0 0
        %1016 = vmatprep.subr.bf16.mxu0 0
        %1017 = vmatpush1.bf16.msra.mxu0 0
        %1018 = vmatprep.subr.bf16.mxu0 0
        %1019 = vmatpush1.bf16.msra.mxu0 0
        %1020 = vmatprep.subr.bf16.mxu0 0
        %1021 = vmatpush1.bf16.msra.mxu0 0
        %1022 = vmatprep.subr.bf16.mxu0 0
        %1023 = vmatpush1.bf16.msra.mxu0 0
        %1024 = vmatprep.subr.bf16.mxu0 0
        %1025 = vmatpush1.bf16.msra.mxu0 0
        %1026 = vmatprep.subr.bf16.mxu0 0
        %1027 = vmatpush1.bf16.msra.mxu0 0
        %1028 = vmatprep.subr.bf16.mxu0 0
        %1029 = vmatpush1.bf16.msra.mxu0 0
        %1030 = vmatprep.mubr.bf16.mxu0 0
        %1031 = vmatmul.mubr.bf16.gmra.mrb[0].mxu0 %v384
        %v1032 = vpop.f32.mrb[0].mxu0
        %v1033 = vadd.f32 0.0, %v1032
        %v1034 = vpop.f32.mrb[0].mxu0
        %v1035 = vadd.f32 0.0, %v1034
        %v1036 = vpop.f32.mrb[0].mxu0
        %v1037 = vadd.f32 0.0, %v1036
        %v1038 = vpop.f32.mrb[0].mxu0
        %v1039 = vadd.f32 0.0, %v1038
        %1040 = vdwg.mxu0
        %v1041 = vadd.f32 %v994, %v1033
        %v1042 = vadd.f32 %v995, %v1035
        %v1043 = vadd.f32 %v996, %v1037
        %v1044 = vadd.f32 %v997, %v1039
        %s1045 = sld [smem:[#allocation11]]
        %v1046 = vstv %s1045
        %v1047 = vadd.f32 %v1041, %v1046
        %v1048 = vadd.f32 %v1043, %v1046
        %1049 = vst [vmem:[%s356] sm:$0xff] %v1047
        %1050 = vst [vmem:[%s356 + $0x8] sm:$0xff] %v1048
        %s1051 = sld [smem:[#allocation11 + $0x1]]
        %v1052 = vstv %s1051
        %v1053 = vadd.f32 %v1042, %v1052
        %v1054 = vadd.f32 %v1044, %v1052
        %1055 = vst [vmem:[%s363] sm:$0xff] %v1053
        %1056 = vst [vmem:[%s363 + $0x8] sm:$0xff] %v1054
        %s1057 = sand.u32 %s155, 1
        %s1058 = scalar_lea.sflag [#allocation4], %s1057
        %s1059 = sand.u32 %s155, 1
        %s1060 = smul.addr %s1059, 16
        %s1061 = scalar_lea.vmem [#allocation12], %s1060
        %s1062 = sand.u32 %s181, 1
        %s1063 = scalar_lea.sflag [#allocation14], %s1062
        %s1064 = sand.u32 %s181, 1
        %s1065 = smul.addr %s1064, 16
        %s1066 = scalar_lea.vmem [#allocation13], %s1065
        // Predicated region
        $region61: #{tpu_custom_call.1} parent=39 // pred_check
          %p1067 = pneg %p165
        $region62: #{tpu_custom_call.1} parent=39 // pred_check_branch
          %1069 = sbr.rel (%p1067) target = $region64
        $region63: #{tpu_custom_call.1} parent=39 // pred_region
          %s1070 = smul.u32 2, %s32
          %s1072 = ssub.s32 256, 256
          %1073 = vsyncadd %s1058, %s1072
          %s1074 = smul.addr %s1070, 128
          %s1075 = scalar_lea.hbm %s5, %s1074
          %s1076 = sshll.u32 %s1061, 4
          %s1077 = int_to_ptr.vmem [resolvable:$true] %s1076
          %1082 = dma.vmem_to_hbm [thread:$0]  %s1077, 256, %s1075, %s1058, 128, 128, 8
        $region64: #{tpu_custom_call.1} parent=39 // pred_fallthru
          _
        // Predicated region
        $region65: #{tpu_custom_call.1} parent=39 // pred_check
          %p1083 = pneg %p191
        $region66: #{tpu_custom_call.1} parent=39 // pred_check_branch
          %1085 = sbr.rel (%p1083) target = $region68
        $region67: #{tpu_custom_call.1} parent=39 // pred_region
          %s1086 = smul.u32 2, %s32
          %s1088 = ssub.s32 256, 256
          %1089 = vsyncadd %s1063, %s1088
          %s1090 = smul.addr %s1086, 128
          %s1091 = scalar_lea.hbm %s6, %s1090
          %s1092 = sshll.u32 %s1066, 4
          %s1093 = int_to_ptr.vmem [resolvable:$true] %s1092
          %1098 = dma.vmem_to_hbm [thread:$0]  %s1093, 256, %s1091, %s1063, 128, 128, 8
        $region68: #{tpu_custom_call.1} parent=39 // pred_fallthru
          _
      $region40: #{tpu_custom_call.1} parent=5 // pred_fallthru
        _
      %p1099 = scmp.le.s32.totalorder 2, %s27
      // Predicated region
      $region69: #{tpu_custom_call.1} parent=5 // pred_check
        %p1100 = pneg %p1099
      $region70: #{tpu_custom_call.1} parent=5 // pred_check_branch
        %1102 = sbr.rel (%p1100) target = $region72
      $region71: #{tpu_custom_call.1} parent=5 // pred_region
        %s1103 = ssub.s32 %s27, 2
        // Predicated region
        $region73: #{tpu_custom_call.1} parent=71 // pred_check
          %p1104 = pneg %p171
        $region74: #{tpu_custom_call.1} parent=71 // pred_check_branch
          %1106 = sbr.rel (%p1104) target = $region76
        $region75: #{tpu_custom_call.1} parent=71 // pred_region
          %s1107 = sand.u32 %s156, 1
          %s1108 = scalar_lea.sflag [#allocation4], %s1107
          %s1109 = sand.u32 %s156, 1
          %s1110 = smul.addr %s1109, 16
          %s1111 = scalar_lea.vmem [#allocation12], %s1110
          %1112 = dma.done %s1108, 256
        $region76: #{tpu_custom_call.1} parent=71 // pred_fallthru
          _
        // Predicated region
        $region77: #{tpu_custom_call.1} parent=71 // pred_check
          %p1113 = pneg %p197
        $region78: #{tpu_custom_call.1} parent=71 // pred_check_branch
          %1115 = sbr.rel (%p1113) target = $region80
        $region79: #{tpu_custom_call.1} parent=71 // pred_region
          %s1116 = sand.u32 %s182, 1
          %s1117 = scalar_lea.sflag [#allocation14], %s1116
          %s1118 = sand.u32 %s182, 1
          %s1119 = smul.addr %s1118, 16
          %s1120 = scalar_lea.vmem [#allocation13], %s1119
          %1121 = dma.done %s1117, 256
        $region80: #{tpu_custom_call.1} parent=71 // pred_fallthru
          _
      $region72: #{tpu_custom_call.1} parent=5 // pred_fallthru
        _
    $region6: #{tpu_custom_call.1} parent=1 // loop_footer
      %s31 = sadd.s32 1, %s27
    $region7: #{tpu_custom_call.1} parent=1 // loop_footer_branch
      %26 = sbr.rel target = $region3
    $region8: #{tpu_custom_call.1} parent=1 // loop_exit
      _
    %1122 = vsyncpa [#allocation3], 1
    %s1123 = scalar_lea.sflag [#allocation3], 1
    %1124 = vsyncpa %s1123, 1
    %1125 = vsyncpa [#allocation7], 1
    %s1126 = scalar_lea.sflag [#allocation7], 1
    %1127 = vsyncpa %s1126, 1
    %1128 = vsyncpa [#allocation10], 1
    %1129 = vsyncpa [#allocation4], 1
    %s1130 = scalar_lea.sflag [#allocation4], 1
    %1131 = vsyncpa %s1130, 1
    %1132 = vsyncpa [#allocation14], 1
    %s1133 = scalar_lea.sflag [#allocation14], 1
    %1134 = vsyncpa %s1133, 1
    %1135 = vsyncpa [#allocation5], 1
    %s1136 = scalar_lea.sflag [#allocation5], 1
    %1137 = vsyncpa %s1136, 1

</llo_original>
